<compile_context>
chip_gen: v7x
topology: tpu7x:2x2x1
jax: 0.10.0
libtpu: 0.0.40
codegen_flags: <defaults>
</compile_context>

<pallas_src>
import jax
import jax.numpy as jnp
from jax.experimental import pallas as pl
from jax.experimental.pallas import tpu as pltpu

_LANES = 128
_ACC_ROWS = 128                         # (128,128) f32 accumulator = 64 KiB
_TARGET_BLOCK_BYTES = 4 * 1024 * 1024   # ~4 MiB per input block per grid step


def _sublane_multiple(dtype):
    return {4: 8, 2: 16, 1: 32}.get(jnp.dtype(dtype).itemsize, 8)


def _make_dice_kernel(acc_rows, n_chunks, steps, total_blocks, tail_rows):
    """Kernel specialized on static geometry.

    tail_rows: None if every block is fully in-bounds, otherwise the number of
    valid rows in the global last block (its out-of-bounds rows are masked).
    """

    def kernel(pred_ref, mask_ref, pm_ref, sum_ref, acc_pm, acc_sum):
        c = pl.program_id(0)
        i = pl.program_id(1)

        @pl.when(i == 0)
        def _():
            acc_pm[...] = jnp.zeros_like(acc_pm)
            acc_sum[...] = jnp.zeros_like(acc_sum)

        def accumulate(valid_rows):
            # valid_rows: None -> unmasked fast path; else static row count.
            if valid_rows is not None:
                row_iota = jax.lax.broadcasted_iota(
                    jnp.int32, (acc_rows, _LANES), 0)

            def body(j, carry):
                r0 = pl.multiple_of(j * acc_rows, acc_rows)
                p = pred_ref[pl.ds(r0, acc_rows), :].astype(jnp.float32)
                m = mask_ref[pl.ds(r0, acc_rows), :].astype(jnp.float32)
                if valid_rows is not None:
                    keep = (row_iota + j * acc_rows) < valid_rows
                    p = jnp.where(keep, p, 0.0)
                    m = jnp.where(keep, m, 0.0)
                acc_pm[...] += p * m
                acc_sum[...] += p + m   # sum(p) + sum(m) == sum(p + m)
                return carry

            jax.lax.fori_loop(0, n_chunks, body, 0)

        if tail_rows is None:
            accumulate(None)
        else:
            gb = c * steps + i          # global block index

            @pl.when(gb < total_blocks - 1)
            def _():
                accumulate(None)

            @pl.when(gb == total_blocks - 1)
            def _():
                accumulate(tail_rows)

        @pl.when(i == steps - 1)
        def _():
            # Tile-preserving reshape + leading-axis sum: pure VPU adds,
            # once per split, producing an (8,128) lane-dense partial.
            pm_ref[...] = jnp.sum(
                acc_pm[...].reshape(acc_rows // 8, 8, _LANES), axis=0)
            sum_ref[...] = jnp.sum(
                acc_sum[...].reshape(acc_rows // 8, 8, _LANES), axis=0)

    return kernel


def dice_loss(pred, mask):
    """Pallas implementation of DiceLoss.forward(pred, mask) -> scalar f32."""
    pred_flat = jnp.reshape(pred, (-1,))
    mask_flat = jnp.reshape(mask, (-1,))
    n = pred_flat.shape[0]

    sub = max(_sublane_multiple(pred.dtype), _sublane_multiple(mask.dtype))
    rows = n // _LANES
    lane_rem = n - rows * _LANES

    counter = jnp.float32(0.0)
    denum = jnp.float32(0.0)

    if rows >= sub:
        # ---- static block geometry ----
        item = max(jnp.dtype(pred.dtype).itemsize, jnp.dtype(mask.dtype).itemsize)
        cap_rows = max(_ACC_ROWS, _TARGET_BLOCK_BYTES // (_LANES * item))
        if rows >= _ACC_ROWS:
            acc_rows = _ACC_ROWS
            block_rows = min(cap_rows, (rows // _ACC_ROWS) * _ACC_ROWS)
        else:
            block_rows = (rows // sub) * sub
            acc_rows = block_rows
        n_chunks = block_rows // acc_rows
        total_blocks = -(-rows // block_rows)                  # ceil
        tail = rows - (total_blocks - 1) * block_rows
        tail_rows = None if tail == block_rows else tail       # ragged last block?
        n_splits = 2 if total_blocks % 2 == 0 else 1
        steps = total_blocks // n_splits

        main_elems = rows * _LANES
        if lane_rem == 0:
            pred2d = jnp.reshape(pred_flat, (rows, _LANES))     # free bitcast
            mask2d = jnp.reshape(mask_flat, (rows, _LANES))
        else:
            # TODO(synk): when n % 128 != 0 this prefix slice may materialize a
            # copy of nearly the whole input before the custom call; consider
            # CompilerParams(allow_input_fusion=...) to fuse it into the kernel.
            pred2d = jnp.reshape(
                jax.lax.slice(pred_flat, (0,), (main_elems,)), (rows, _LANES))
            mask2d = jnp.reshape(
                jax.lax.slice(mask_flat, (0,), (main_elems,)), (rows, _LANES))

        kernel = _make_dice_kernel(acc_rows, n_chunks, steps, total_blocks,
                                   tail_rows)
        in_map = lambda c, i: (c * steps + i, 0)
        out_map = lambda c, i: (c, 0)

        # Raise the scoped-VMEM limit only when the double-buffered pipeline
        # actually needs it (v5e default is 16 MiB; 32 MiB = v6e/v7x default).
        p_item = jnp.dtype(pred.dtype).itemsize
        m_item = jnp.dtype(mask.dtype).itemsize
        vmem_need = (2 * block_rows * _LANES * (p_item + m_item)
                     + 2 * acc_rows * _LANES * 4)
        cp_kwargs = dict(dimension_semantics=("parallel", "arbitrary"))
        if vmem_need > 12 * 1024 * 1024:
            cp_kwargs["vmem_limit_bytes"] = 32 * 1024 * 1024

        part_pm, part_sum = pl.pallas_call(
            kernel,
            out_shape=(
                jax.ShapeDtypeStruct((n_splits * 8, _LANES), jnp.float32),
                jax.ShapeDtypeStruct((n_splits * 8, _LANES), jnp.float32),
            ),
            grid_spec=pltpu.PrefetchScalarGridSpec(
                num_scalar_prefetch=0,
                grid=(n_splits, steps),
                in_specs=[
                    pl.BlockSpec((block_rows, _LANES), in_map),
                    pl.BlockSpec((block_rows, _LANES), in_map),
                ],
                out_specs=[
                    pl.BlockSpec((8, _LANES), out_map),
                    pl.BlockSpec((8, _LANES), out_map),
                ],
                scratch_shapes=[
                    pltpu.VMEM((acc_rows, _LANES), jnp.float32),
                    pltpu.VMEM((acc_rows, _LANES), jnp.float32),
                ],
            ),
            compiler_params=pltpu.CompilerParams(**cp_kwargs),
        )(pred2d, mask2d)

        counter = counter + jnp.sum(part_pm)
        denum = denum + jnp.sum(part_sum)

        if lane_rem:
            # < 128 leftover elements: tiny plain-JAX epilogue.
            p_tail = jax.lax.slice(pred_flat, (main_elems,), (n,)).astype(jnp.float32)
            m_tail = jax.lax.slice(mask_flat, (main_elems,), (n,)).astype(jnp.float32)
            counter = counter + jnp.sum(p_tail * m_tail)
            denum = denum + jnp.sum(p_tail + m_tail)
    else:
        # Too small for a lane-dense block: plain JAX.
        p = pred_flat.astype(jnp.float32)
        m = mask_flat.astype(jnp.float32)
        counter = jnp.sum(p * m)
        denum = jnp.sum(p) + jnp.sum(m)

    dice = 2.0 * counter / (denum + jnp.float32(1e-08))
    return jnp.float32(1.0) - dice


def _dice_loss_ref(pred, mask):
    """Pure-JAX reference matching the PyTorch module exactly."""
    p = jnp.reshape(pred, (-1,)).astype(jnp.float32)
    m = jnp.reshape(mask, (-1,)).astype(jnp.float32)
    counter = jnp.sum(p * m)
    denum = jnp.sum(p) + jnp.sum(m) + 1e-08
    return 1.0 - 2.0 * counter / denum


if __name__ == "__main__":
    key = jax.random.PRNGKey(0)
    k1, k2 = jax.random.split(key)

    # NCHW like the typical PyTorch segmentation setup.
    pred = jax.nn.sigmoid(jax.random.normal(k1, (2, 4, 16, 16), dtype=jnp.float32))
    mask = (jax.random.uniform(k2, (2, 4, 16, 16)) > 0.5).astype(jnp.float32)

    loss = jax.block_until_ready(jax.jit(dice_loss)(pred, mask))
    ref = jax.block_until_ready(_dice_loss_ref(pred, mask))

    assert jnp.allclose(loss, ref, rtol=1e-5, atol=1e-6), (loss, ref)
    print("KERNEL_OK")
</pallas_src>

<mosaic_0001>
module attributes {stable_mosaic.version = 11 : i64} {
  func.func @kernel(%arg0: i32, %arg1: i32, %arg2: memref<16x128xf32, #tpu.memory_space<vmem>>, %arg3: memref<16x128xf32, #tpu.memory_space<vmem>>, %arg4: memref<8x128xf32, #tpu.memory_space<vmem>>, %arg5: memref<8x128xf32, #tpu.memory_space<vmem>>, %arg6: memref<16x128xf32, #tpu.memory_space<vmem>>, %arg7: memref<16x128xf32, #tpu.memory_space<vmem>>) attributes {dimension_semantics = [#tpu.dimension_semantics<parallel>, #tpu.dimension_semantics<arbitrary>], iteration_bounds = array<i64: 1, 1>, scalar_prefetch = 0 : i64, scratch_operands = 2 : i64, tpu.core_type = #tpu.core_type<tc>, window_params = [{transform_indices = @transform_0, window_bounds = array<i64: 16, 128>}, {transform_indices = @transform_1, window_bounds = array<i64: 16, 128>}, {transform_indices = @transform_2, window_bounds = array<i64: 8, 128>}, {transform_indices = @transform_3, window_bounds = array<i64: 8, 128>}]} {
    %c0_i32 = arith.constant 0 : i32
    %0 = arith.cmpi eq, %arg1, %c0_i32 : i32
    %1 = arith.extui %0 : i1 to i32
    %c0_i32_0 = arith.constant 0 : i32
    %2 = arith.cmpi ne, %1, %c0_i32_0 : i32
    scf.if %2 {
      %cst = arith.constant 0.000000e+00 : f32
      %20 = vector.broadcast %cst : f32 to vector<16x128xf32>
      %c0_13 = arith.constant 0 : index
      %c0_14 = arith.constant 0 : index
      %21 = vector.load %arg6[%c0_13, %c0_14] : memref<16x128xf32, #tpu.memory_space<vmem>>, vector<16x128xf32>
      tpu.vector_store %arg6[%c0_13, %c0_14], %20 {strides = array<i32>} : memref<16x128xf32, #tpu.memory_space<vmem>>, vector<16x128xf32>,
      %cst_15 = arith.constant 0.000000e+00 : f32
      %22 = vector.broadcast %cst_15 : f32 to vector<16x128xf32>
      %c0_16 = arith.constant 0 : index
      %c0_17 = arith.constant 0 : index
      %23 = vector.load %arg7[%c0_16, %c0_17] : memref<16x128xf32, #tpu.memory_space<vmem>>, vector<16x128xf32>
      tpu.vector_store %arg7[%c0_16, %c0_17], %22 {strides = array<i32>} : memref<16x128xf32, #tpu.memory_space<vmem>>, vector<16x128xf32>,
    } else {
    }
    %c0_i32_1 = arith.constant 0 : i32
    %c16_i32 = arith.constant 16 : i32
    %3 = arith.muli %c0_i32_1, %c16_i32 : i32
    %4 = tpu.assume_multiple %3, 16 : i32
    %5 = arith.index_cast %4 : i32 to index
    %c0 = arith.constant 0 : index
    %6 = vector.load %arg2[%5, %c0] : memref<16x128xf32, #tpu.memory_space<vmem>>, vector<16x128xf32>
    %7 = arith.index_cast %4 : i32 to index
    %c0_2 = arith.constant 0 : index
    %8 = vector.load %arg3[%7, %c0_2] : memref<16x128xf32, #tpu.memory_space<vmem>>, vector<16x128xf32>
    %c0_3 = arith.constant 0 : index
    %c0_4 = arith.constant 0 : index
    %9 = vector.load %arg6[%c0_3, %c0_4] : memref<16x128xf32, #tpu.memory_space<vmem>>, vector<16x128xf32>
    %10 = arith.mulf %6, %8 : vector<16x128xf32>
    %11 = arith.addf %9, %10 : vector<16x128xf32>
    %c0_5 = arith.constant 0 : index
    %c0_6 = arith.constant 0 : index
    %12 = vector.load %arg6[%c0_5, %c0_6] : memref<16x128xf32, #tpu.memory_space<vmem>>, vector<16x128xf32>
    tpu.vector_store %arg6[%c0_5, %c0_6], %11 {strides = array<i32>} : memref<16x128xf32, #tpu.memory_space<vmem>>, vector<16x128xf32>,
    %c0_7 = arith.constant 0 : index
    %c0_8 = arith.constant 0 : index
    %13 = vector.load %arg7[%c0_7, %c0_8] : memref<16x128xf32, #tpu.memory_space<vmem>>, vector<16x128xf32>
    %14 = arith.addf %6, %8 : vector<16x128xf32>
    %15 = arith.addf %13, %14 : vector<16x128xf32>
    %c0_9 = arith.constant 0 : index
    %c0_10 = arith.constant 0 : index
    %16 = vector.load %arg7[%c0_9, %c0_10] : memref<16x128xf32, #tpu.memory_space<vmem>>, vector<16x128xf32>
    tpu.vector_store %arg7[%c0_9, %c0_10], %15 {strides = array<i32>} : memref<16x128xf32, #tpu.memory_space<vmem>>, vector<16x128xf32>,
    %c1_i32 = arith.constant 1 : i32
    %c0_i32_11 = arith.constant 0 : i32
    %17 = arith.cmpi eq, %arg1, %c0_i32_11 : i32
    %18 = arith.extui %17 : i1 to i32
    %c0_i32_12 = arith.constant 0 : i32
    %19 = arith.cmpi ne, %18, %c0_i32_12 : i32
    scf.if %19 {
      %c0_13 = arith.constant 0 : index
      %c0_14 = arith.constant 0 : index
      %20 = vector.load %arg6[%c0_13, %c0_14] : memref<16x128xf32, #tpu.memory_space<vmem>>, vector<16x128xf32>
      %21 = vector.shape_cast %20 : vector<16x128xf32> to vector<2x8x128xf32>
      %cst = arith.constant dense<0.000000e+00> : vector<8x128xf32>
      %22 = vector.multi_reduction <add>, %21, %cst [0] : vector<2x8x128xf32> to vector<8x128xf32>
      %c0_15 = arith.constant 0 : index
      %c0_16 = arith.constant 0 : index
      %23 = vector.load %arg4[%c0_15, %c0_16] : memref<8x128xf32, #tpu.memory_space<vmem>>, vector<8x128xf32>
      tpu.vector_store %arg4[%c0_15, %c0_16], %22 {strides = array<i32>} : memref<8x128xf32, #tpu.memory_space<vmem>>, vector<8x128xf32>,
      %c0_17 = arith.constant 0 : index
      %c0_18 = arith.constant 0 : index
      %24 = vector.load %arg7[%c0_17, %c0_18] : memref<16x128xf32, #tpu.memory_space<vmem>>, vector<16x128xf32>
      %25 = vector.shape_cast %24 : vector<16x128xf32> to vector<2x8x128xf32>
      %cst_19 = arith.constant dense<0.000000e+00> : vector<8x128xf32>
      %26 = vector.multi_reduction <add>, %25, %cst_19 [0] : vector<2x8x128xf32> to vector<8x128xf32>
      %c0_20 = arith.constant 0 : index
      %c0_21 = arith.constant 0 : index
      %27 = vector.load %arg5[%c0_20, %c0_21] : memref<8x128xf32, #tpu.memory_space<vmem>>, vector<8x128xf32>
      tpu.vector_store %arg5[%c0_20, %c0_21], %26 {strides = array<i32>} : memref<8x128xf32, #tpu.memory_space<vmem>>, vector<8x128xf32>,
    } else {
    }
    return
  }
  func.func @transform_0(%arg0: i32, %arg1: i32) -> (i32, i32) {
    %c1_i32 = arith.constant 1 : i32
    %0 = arith.muli %arg0, %c1_i32 : i32
    %1 = arith.addi %0, %arg1 : i32
    %c0_i32 = arith.constant 0 : i32
    %c0_i32_0 = arith.constant 0 : i32
    return %1, %c0_i32 : i32, i32
  }
  func.func @transform_1(%arg0: i32, %arg1: i32) -> (i32, i32) {
    %c1_i32 = arith.constant 1 : i32
    %0 = arith.muli %arg0, %c1_i32 : i32
    %1 = arith.addi %0, %arg1 : i32
    %c0_i32 = arith.constant 0 : i32
    %c0_i32_0 = arith.constant 0 : i32
    return %1, %c0_i32 : i32, i32
  }
  func.func @transform_2(%arg0: i32, %arg1: i32) -> (i32, i32) {
    %c0_i32 = arith.constant 0 : i32
    %c0_i32_0 = arith.constant 0 : i32
    return %arg0, %c0_i32 : i32, i32
  }
  func.func @transform_3(%arg0: i32, %arg1: i32) -> (i32, i32) {
    %c0_i32 = arith.constant 0 : i32
    %c0_i32_0 = arith.constant 0 : i32
    return %arg0, %c0_i32 : i32, i32
  }
}

</mosaic_0001>

<llo_original>
// kernel: dice_loss.1
$region0: #{dice_loss.1}
  #allocation0 [shape = 'u32[]', space=smem, size = 0x4, offset = 0x4, fixed_abs, tag = 'smem constant byte address 0x4 - core index']
  #allocation1 [shape = 'u32[144,128]{1,0:T(1,128)}', space=vmem, size = 0x12000, scoped, tag = 'internal scratch']
  #allocation2 [shape = 'f32[16,128]{1,0:T(8,128)}', space=vmem, size = 0x2000, scoped, tag = 'scratch operand']
  #allocation3 [shape = 'f32[16,128]{1,0:T(8,128)}', space=vmem, size = 0x2000, scoped, tag = 'scratch operand']
  %s0 = inlined_call_operand.vmem [shape: f32[16,128], index: 0, kind: input, shape index: {}]
  %s1 = inlined_call_operand.vmem [shape: f32[16,128], index: 1, kind: input, shape index: {}]
  %s2 = inlined_call_operand.vmem [shape: f32[8,128], index: 2, kind: output, shape index: {0}]
  %s3 = inlined_call_operand.vmem [shape: f32[8,128], index: 3, kind: output, shape index: {1}]
  %4 = xla_tuple %s2, %s3
  %s5 = sld [smem:[#allocation0]]
  $region34: #{dice_loss.1} parent=0
    _
  %s7 = ssub.s32 1, %s5
  %s8 = scalar_select 0, %s7, %s5
  // Predicated region
  $region2: #{dice_loss.1} parent=0 // pred_check
    _
  $region3: #{dice_loss.1} parent=0 // pred_check_branch
    %10 = sbr.rel (0) target = $region5
  $region4: #{dice_loss.1} parent=0 // pred_region
    %s11 = sadd.s32 0, 0
    %s12 = smul.u32 2, %s11
    %p13 = scmp.lt.s32.totalorder %s12, 1
    %s14 = scalar_select %p13, %s12, 1
    %s15 = smul.addr %s14, 8
    %s16 = scalar_lea.vmem %s0, %s15
    %s17 = sadd.s32 0, 0
    %s18 = smul.u32 2, %s17
  $region5: #{dice_loss.1} parent=0 // pred_fallthru
    _
  // Predicated region
  $region6: #{dice_loss.1} parent=0 // pred_check
    _
  $region7: #{dice_loss.1} parent=0 // pred_check_branch
    %20 = sbr.rel (0) target = $region9
  $region8: #{dice_loss.1} parent=0 // pred_region
    %s21 = sadd.s32 0, 0
    %s22 = smul.u32 2, %s21
    %p23 = scmp.lt.s32.totalorder %s22, 1
    %s24 = scalar_select %p23, %s22, 1
    %s25 = smul.addr %s24, 8
    %s26 = scalar_lea.vmem %s1, %s25
    %s27 = sadd.s32 0, 0
    %s28 = smul.u32 2, %s27
  $region9: #{dice_loss.1} parent=0 // pred_fallthru
    _
  %s29 = sadd.s32 0, 0
  %s30 = smul.u32 2, %s29
  %p31 = scmp.lt.s32.totalorder %s30, 1
  %s32 = scalar_select %p31, %s30, 1
  %s33 = smul.addr %s32, 8
  %s34 = scalar_lea.vmem %s0, %s33
  %s35 = sadd.s32 0, 0
  %s36 = smul.u32 2, %s35
  %p37 = scmp.lt.s32.totalorder %s36, 1
  %s38 = scalar_select %p37, %s36, 1
  %s39 = smul.addr %s38, 8
  %s40 = scalar_lea.vmem %s1, %s39
  %s41 = sadd.s32 0, 0
  %s42 = smul.u32 2, %s41
  %p43 = scmp.lt.s32.totalorder %s42, 1
  %s44 = scalar_select %p43, %s42, 1
  %s45 = smul.addr %s44, 8
  %s46 = scalar_lea.vmem %s0, %s45
  %s47 = sadd.s32 0, 0
  %s48 = smul.u32 2, %s47
  %s49 = sadd.s32 0, 0
  %s50 = smul.u32 2, %s49
  %p51 = scmp.lt.s32.totalorder %s50, 1
  %s52 = scalar_select %p51, %s50, 1
  %s53 = smul.addr %s52, 8
  %s54 = scalar_lea.vmem %s1, %s53
  %s55 = sadd.s32 0, 0
  %s56 = smul.u32 2, %s55
  %p57 = scmp.eq.s32.totalorder 0, 0
  // Predicated region
  $region10: #{dice_loss.1} parent=0 // pred_check
    %p58 = pneg %p57
  $region11: #{dice_loss.1} parent=0 // pred_check_branch
    %60 = sbr.rel (%p58) target = $region13
  $region12: #{dice_loss.1} parent=0 // pred_region
    %61 = vst [vmem:[#allocation2] sm:$0xff] 0.0
    %62 = vst [vmem:[#allocation2 + $0x8] sm:$0xff] 0.0
    %63 = vst [vmem:[#allocation3] sm:$0xff] 0.0
    %64 = vst [vmem:[#allocation3 + $0x8] sm:$0xff] 0.0
  $region13: #{dice_loss.1} parent=0 // pred_fallthru
    _
  %v65 = vld [vmem:[%s46] sm:$0xff]
  %v66 = vld [vmem:[%s46 + $0x8] sm:$0xff]
  %v67 = vld [vmem:[%s54] sm:$0xff]
  %v68 = vld [vmem:[%s54 + $0x8] sm:$0xff]
  %v69 = vld [vmem:[#allocation2] sm:$0xff]
  %v70 = vld [vmem:[#allocation2 + $0x8] sm:$0xff]
  %v71 = vmul.f32 %v65, %v67
  %v72 = vmul.f32 %v66, %v68
  %v73 = vadd.f32 %v69, %v71
  %v74 = vadd.f32 %v70, %v72
  %75 = vst [vmem:[#allocation2] sm:$0xff] %v73
  %76 = vst [vmem:[#allocation2 + $0x8] sm:$0xff] %v74
  %v77 = vld [vmem:[#allocation3] sm:$0xff]
  %v78 = vld [vmem:[#allocation3 + $0x8] sm:$0xff]
  %v79 = vadd.f32 %v65, %v67
  %v80 = vadd.f32 %v66, %v68
  %v81 = vadd.f32 %v77, %v79
  %v82 = vadd.f32 %v78, %v80
  %83 = vst [vmem:[#allocation3] sm:$0xff] %v81
  %84 = vst [vmem:[#allocation3 + $0x8] sm:$0xff] %v82
  // Predicated region
  $region14: #{dice_loss.1} parent=0 // pred_check
    %p85 = pneg %p57
  $region15: #{dice_loss.1} parent=0 // pred_check_branch
    %87 = sbr.rel (%p85) target = $region17
  $region16: #{dice_loss.1} parent=0 // pred_region
    %v88 = vld [vmem:[#allocation2] sm:$0xff]
    %v89 = vld [vmem:[#allocation2 + $0x8] sm:$0xff]
    %v90 = vadd.f32 %v88, %v89
    %91 = vst [vmem:[%s2] sm:$0xff] %v90
    %v92 = vld [vmem:[#allocation3] sm:$0xff]
    %v93 = vld [vmem:[#allocation3 + $0x8] sm:$0xff]
    %v94 = vadd.f32 %v92, %v93
    %95 = vst [vmem:[%s3] sm:$0xff] %v94
  $region17: #{dice_loss.1} parent=0 // pred_fallthru
    _
  // Predicated region
  $region18: #{dice_loss.1} parent=0 // pred_check
    _
  $region19: #{dice_loss.1} parent=0 // pred_check_branch
    %97 = sbr.rel (0) target = $region21
  $region20: #{dice_loss.1} parent=0 // pred_region
    _
  $region21: #{dice_loss.1} parent=0 // pred_fallthru
    _
  // Predicated region
  $region22: #{dice_loss.1} parent=0 // pred_check
    _
  $region23: #{dice_loss.1} parent=0 // pred_check_branch
    %99 = sbr.rel (0) target = $region25
  $region24: #{dice_loss.1} parent=0 // pred_region
    _
  $region25: #{dice_loss.1} parent=0 // pred_fallthru
    _
  // Predicated region
  $region26: #{dice_loss.1} parent=0 // pred_check
    _
  $region27: #{dice_loss.1} parent=0 // pred_check_branch
    %101 = sbr.rel (0) target = $region29
  $region28: #{dice_loss.1} parent=0 // pred_region
    _
  $region29: #{dice_loss.1} parent=0 // pred_fallthru
    _
  // Predicated region
  $region30: #{dice_loss.1} parent=0 // pred_check
    _
  $region31: #{dice_loss.1} parent=0 // pred_check_branch
    %103 = sbr.rel (0) target = $region33
  $region32: #{dice_loss.1} parent=0 // pred_region
    _
  $region33: #{dice_loss.1} parent=0 // pred_fallthru
    _

</llo_original>
